<compile_context>
chip_gen: v5e
topology: v5e:2x2
jax: 0.10.0
libtpu: 0.0.40
codegen_flags: <defaults>
</compile_context>

<pallas_src>
import jax
import jax.numpy as jnp
import numpy as np
from jax import lax
from jax.experimental import pallas as pl
from jax.experimental.pallas import tpu as pltpu

EPS = 1e-5


def _bilinear_matrix(out_size: int, in_size: int) -> np.ndarray:
    """(out_size, in_size) operator reproducing F.interpolate(mode='bilinear',
    align_corners=False) along one axis (PyTorch half-pixel convention)."""
    scale = in_size / out_size
    o = np.arange(out_size, dtype=np.float64)
    src = np.maximum((o + 0.5) * scale - 0.5, 0.0)      # PyTorch clamps negatives
    i0 = np.minimum(np.floor(src).astype(np.int64), in_size - 1)
    i1 = np.minimum(i0 + 1, in_size - 1)
    w1 = src - i0
    w0 = 1.0 - w1
    mat = np.zeros((out_size, in_size), dtype=np.float64)
    mat[np.arange(out_size), i0] += w0
    mat[np.arange(out_size), i1] += w1
    return mat


def _merge_kernel(xl_ref, xh_ref, w_ref, b_ref, rh_ref, rwt_ref, o_ref,
                  y_scr, t_scr):
    """One (batch, channel-tile) block.

    Shapes seen by the kernel (batch dim squeezed by BlockSpec):
      xl_ref : (Cl, Hl*Wl)     w_ref : (Ct, Cl)    rh_ref : (Hh, Hl)
      xh_ref : (Ct, Hh, Wh)    b_ref : (Ct, 1)     rwt_ref: (Wl, Wh)
      o_ref  : (Ct, Hh, Wh)    y_scr : (Ct, Hl*Wl) t_scr  : (Ct, Hl, Wl)
    """
    ct, hh, wh = o_ref.shape
    hl = rh_ref.shape[1]
    wl = rwt_ref.shape[0]

    # 1) 1x1 conv with eval-mode BatchNorm folded into scale (w) / shift (b):
    #    ONE (Ct,Cl)@(Cl,Hl*Wl) MXU matmul, f32 accumulation.  Adding the bias
    #    before the resize is exact (bilinear rows sum to 1).
    y_scr[...] = (jnp.dot(w_ref[...], xl_ref[...],
                          preferred_element_type=jnp.float32)
                  + b_ref[...].astype(jnp.float32))

    # 2) Relayout flat (Ct, Hl*Wl) -> (Ct, Hl, Wl).  Pure copies of the low-res
    #    tensor only (no matmuls, no output stores).  Written explicitly because
    #    a lane-splitting jnp.reshape is not reliably lowered by Mosaic; the data
    #    movement itself is the same a reshape would perform.
    for h in range(hl):                       # small static trip count (Hl)
        t_scr[:, h, :] = y_scr[:, h * wl:(h + 1) * wl]

    # 3) W-axis bilinear resize: one batched dot_general over the channel tile
    #    (batch=c, per-batch (Hl,Wl)@(Wl,Wh)), f32 accumulation.
    t = t_scr[...]                                                    # (Ct,Hl,Wl)
    rwb = jnp.broadcast_to(rwt_ref[...].astype(jnp.float32), (ct, wl, wh))
    u = lax.dot_general(t, rwb, (((2,), (1,)), ((0,), (0,))),
                        preferred_element_type=jnp.float32)           # (Ct,Hl,Wh)

    # 4) H-axis bilinear resize: one batched dot_general over the channel tile
    #    (batch=c, per-batch (Hh,Hl)@(Hl,Wh)); result lands directly in the
    #    (Ct, Hh, Wh) output layout.
    rhb = jnp.broadcast_to(rh_ref[...].astype(jnp.float32), (ct, hh, hl))
    z = lax.dot_general(rhb, u, (((2,), (1,)), ((0,), (0,))),
                        preferred_element_type=jnp.float32)           # (Ct,Hh,Wh)

    # 5) Residual add + relu + cast: one vectorized epilogue, one full-block store.
    o_ref[...] = jnp.maximum(z + xh_ref[...].astype(jnp.float32),
                             0.0).astype(o_ref.dtype)


def _vmem_limit_bytes() -> int:
    try:
        cap = pltpu.get_tpu_info().vmem_capacity_bytes
    except Exception:
        cap = 64 * 1024 * 1024          # conservative: v7x per-TensorCore VMEM
    # 40 MiB on v7x (64 MiB physical), 80 MiB on v5e/v6e (128 MiB physical).
    return max(32 * 1024 * 1024, min(int(cap) * 5 // 8, 96 * 1024 * 1024))


def _pick_channel_tile(n, cl, ch, hl, wl, hh, wh, itemsize, budget) -> int:
    """Channel tile sized against VMEM (double-buffered blocks + scratch)."""
    def vmem_bytes(ct):
        xl_b = cl * hl * wl * itemsize
        xh_b = ct * hh * wh * itemsize
        out_b = ct * hh * wh * itemsize
        w_b = ct * cl * itemsize
        scr = ct * hl * wl * 4 * 2 + ct * (wl * wh + hh * hl) * 4
        return 2 * (xl_b + xh_b + out_b + w_b) + scr

    ct = min(ch, 128)
    while ct > 8 and vmem_bytes(ct) > budget:
        ct = max(8, (ct // 2 + 7) // 8 * 8)
    # v7x has 2 TensorCores sharded over "parallel" grid axes: make sure there
    # are at least 2 similar-cost parallel steps (split channels when N is 1).
    if n * ((ch + ct - 1) // ct) < 2 and ch > 8:
        ct = max(8, ((ch + 1) // 2 + 7) // 8 * 8)
    return min(ct, ch)


@jax.jit
def _merge_forward(x_low, x_high, w, b, rh, rwt):
    n, cl, hl, wl = x_low.shape
    _, ch, hh, wh = x_high.shape
    sl = hl * wl

    xl_flat = x_low.reshape(n, cl, sl)            # free metadata reshape (in-jit)
    b2 = b.reshape(ch, 1).astype(jnp.float32)     # keep the folded bias in f32

    itemsize = max(x_low.dtype.itemsize, x_high.dtype.itemsize)
    vmem_limit = _vmem_limit_bytes()
    ct = _pick_channel_tile(n, cl, ch, hl, wl, hh, wh, itemsize, vmem_limit // 2)
    nct = pl.cdiv(ch, ct)

    flops = 2 * n * ch * (cl * hl * wl + hl * wl * wh + hh * hl * wh)
    bytes_accessed = int(
        x_low.size * x_low.dtype.itemsize
        + 2 * x_high.size * x_high.dtype.itemsize           # xh read + out write
        + w.size * w.dtype.itemsize + b.size * 4
        + rh.size * rh.dtype.itemsize + rwt.size * rwt.dtype.itemsize)

    return pl.pallas_call(
        _merge_kernel,
        out_shape=jax.ShapeDtypeStruct((n, ch, hh, wh), x_high.dtype),
        grid=(n, nct),
        in_specs=[
            pl.BlockSpec((None, cl, sl), lambda bb, j: (bb, 0, 0)),
            pl.BlockSpec((None, ct, hh, wh), lambda bb, j: (bb, j, 0, 0)),
            pl.BlockSpec((ct, cl), lambda bb, j: (j, 0)),
            pl.BlockSpec((ct, 1), lambda bb, j: (j, 0)),
            pl.BlockSpec((hh, hl), lambda bb, j: (0, 0)),
            pl.BlockSpec((wl, wh), lambda bb, j: (0, 0)),
        ],
        out_specs=pl.BlockSpec((None, ct, hh, wh), lambda bb, j: (bb, j, 0, 0)),
        scratch_shapes=[
            pltpu.VMEM((ct, sl), jnp.float32),       # conv output (flat spatial)
            pltpu.VMEM((ct, hl, wl), jnp.float32),   # conv output, (Hl, Wl) layout
        ],
        compiler_params=pltpu.CompilerParams(
            dimension_semantics=("parallel", "parallel"),
            vmem_limit_bytes=vmem_limit),
        cost_estimate=pl.CostEstimate(flops=flops, transcendentals=0,
                                      bytes_accessed=bytes_accessed),
    )(xl_flat, x_high, w, b2, rh, rwt)


class MergeBlockPallas:
    """Pallas-TPU port of MergeBlock: conv1x1 -> BN -> bilinear resize -> add -> relu."""

    def __init__(self, n_channels_low: int, n_channels_high: int, key,
                 param_dtype=jnp.float32):
        # Deterministic synthetic parameters (same shapes as the torch module).
        w = jax.random.normal(key, (n_channels_high, n_channels_low), jnp.float32) * 0.1
        gamma = 1.0 + 0.1 * jnp.arange(n_channels_high, dtype=jnp.float32)
        beta = 0.05 * jnp.arange(n_channels_high, dtype=jnp.float32) - 0.1
        running_mean = 0.02 * jnp.arange(n_channels_high, dtype=jnp.float32)
        running_var = 1.0 + 0.05 * jnp.arange(n_channels_high, dtype=jnp.float32)
        # TODO(synk): BatchNorm is applied in eval mode (running stats folded into
        # the 1x1 conv); training-mode batch statistics are not implemented.
        scale = gamma / jnp.sqrt(running_var + EPS)
        self.param_dtype = param_dtype
        # Use bfloat16 on v6e/v7x to halve DMA bytes; f32 accumulation stays in-kernel.
        self.w_folded = (w * scale[:, None]).astype(param_dtype)           # (Ch, Cl)
        self.b_folded = (beta - scale * running_mean)                      # (Ch,) f32
        self.n_low = n_channels_low
        self.n_high = n_channels_high
        self._resize_cache = {}
        self.rh_np = None            # kept for the reference check
        self.rw_np = None

    def _resize_mats(self, hl, wl, hh, wh):
        key = (hl, wl, hh, wh)
        if key not in self._resize_cache:
            rh = _bilinear_matrix(hh, hl)                 # (Hh, Hl)
            rw = _bilinear_matrix(wh, wl)                 # (Wh, Wl)
            # Resize matrices stay f32 (tiny) so bilinear rows still sum to ~1.
            self._resize_cache[key] = (jnp.asarray(rh, jnp.float32),
                                       jnp.asarray(rw.T, jnp.float32),
                                       rh, rw)
        rh_dev, rwt_dev, rh_np, rw_np = self._resize_cache[key]
        self.rh_np, self.rw_np = rh_np, rw_np
        return rh_dev, rwt_dev

    def __call__(self, x):
        # Mirrors the torch forward: mutates the feature list in place, returns None.
        x_low = x.pop()
        x_high = x[-1]
        x[-1] = self._forward(x_low, x_high)
        return None

    def _forward(self, x_low, x_high):
        n, cl, hl, wl = x_low.shape
        nh, ch, hh, wh = x_high.shape
        assert n == nh and cl == self.n_low and ch == self.n_high
        rh, rwt = self._resize_mats(hl, wl, hh, wh)
        return _merge_forward(x_low, x_high, self.w_folded, self.b_folded, rh, rwt)


def _to_f64(a):
    return np.asarray(jnp.asarray(a, jnp.float32), np.float64)


def _reference_np(x_low, x_high, w_f, b_f, rh, rw):
    """Pure numpy (float64) reference of the same forward semantics."""
    xl = _to_f64(x_low)
    xh = _to_f64(x_high)
    w = _to_f64(w_f)
    b = _to_f64(b_f)
    y = np.einsum("oc,nchw->nohw", w, xl) + b[None, :, None, None]
    # rh: (Hh, Hl) labelled 'ab'; rw: (Wh, Wl) labelled 'cd'; y low-res 'nobd'.
    z = np.einsum("ab,cd,nobd->noac", rh, rw, y)
    return np.maximum(z + xh, 0.0)


if __name__ == "__main__":
    key = jax.random.PRNGKey(0)
    k_param, k_high, k_low = jax.random.split(key, 3)

    N = 2
    C_LOW, C_HIGH = 16, 8
    H_LOW, W_LOW = 8, 8
    H_HIGH, W_HIGH = 16, 16

    x_high = jax.random.normal(k_high, (N, C_HIGH, H_HIGH, W_HIGH), jnp.float32)
    x_low = jax.random.normal(k_low, (N, C_LOW, H_LOW, W_LOW), jnp.float32)

    # --- float32 path (matches the torch module's numerics exactly) ---
    block = MergeBlockPallas(C_LOW, C_HIGH, k_param, param_dtype=jnp.float32)
    feats = [x_high, x_low]
    block(feats)                         # mutates feats: pops x_low, rewrites x[-1]
    out = feats[-1]
    jax.block_until_ready(out)
    assert out.shape == (N, C_HIGH, H_HIGH, W_HIGH)
    ref = _reference_np(x_low, x_high, block.w_folded, block.b_folded,
                        block.rh_np, block.rw_np)
    np.testing.assert_allclose(np.asarray(out, np.float64), ref,
                               rtol=1e-3, atol=1e-3)

    # --- bfloat16 path (halves HBM traffic on v6e/v7x; f32 accumulation kept) ---
    block16 = MergeBlockPallas(C_LOW, C_HIGH, k_param, param_dtype=jnp.bfloat16)
    xh16 = x_high.astype(jnp.bfloat16)
    xl16 = x_low.astype(jnp.bfloat16)
    feats16 = [xh16, xl16]
    block16(feats16)
    out16 = feats16[-1]
    jax.block_until_ready(out16)
    ref16 = _reference_np(xl16, xh16, block16.w_folded, block16.b_folded,
                          block16.rh_np, block16.rw_np)
    np.testing.assert_allclose(_to_f64(out16), ref16, rtol=3e-2, atol=3e-2)

    print("KERNEL_OK")
</pallas_src>

<mosaic_0001>
module attributes {stable_mosaic.version = 11 : i64} {
  func.func @_merge_kernel(%arg0: i32, %arg1: i32, %arg2: memref<1x16x64xf32, #tpu.memory_space<vmem>>, %arg3: memref<1x8x16x16xf32, #tpu.memory_space<vmem>>, %arg4: memref<8x16xf32, #tpu.memory_space<vmem>>, %arg5: memref<8x1xf32, #tpu.memory_space<vmem>>, %arg6: memref<16x8xf32, #tpu.memory_space<vmem>>, %arg7: memref<8x16xf32, #tpu.memory_space<vmem>>, %arg8: memref<1x8x16x16xf32, #tpu.memory_space<vmem>>, %arg9: memref<8x64xf32, #tpu.memory_space<vmem>>, %arg10: memref<8x8x8xf32, #tpu.memory_space<vmem>>) attributes {dimension_semantics = [#tpu.dimension_semantics<parallel>, #tpu.dimension_semantics<parallel>], iteration_bounds = array<i64: 2, 1>, scalar_prefetch = 0 : i64, scratch_operands = 2 : i64, tpu.core_type = #tpu.core_type<tc>, window_params = [{transform_indices = @transform_0, window_bounds = array<i64: 1, 16, 64>}, {transform_indices = @transform_1, window_bounds = array<i64: 1, 8, 16, 16>}, {transform_indices = @transform_2, window_bounds = array<i64: 8, 16>}, {transform_indices = @transform_3, window_bounds = array<i64: 8, 1>}, {pipeline_mode = #tpu.pipeline_mode<synchronous>, transform_indices = @transform_4, window_bounds = array<i64: 16, 8>}, {pipeline_mode = #tpu.pipeline_mode<synchronous>, transform_indices = @transform_5, window_bounds = array<i64: 8, 16>}, {transform_indices = @transform_6, window_bounds = array<i64: 1, 8, 16, 16>}]} {
    %c0 = arith.constant 0 : index
    %c0_0 = arith.constant 0 : index
    %0 = vector.load %arg4[%c0, %c0_0] : memref<8x16xf32, #tpu.memory_space<vmem>>, vector<8x16xf32>
    %c0_1 = arith.constant 0 : index
    %c0_2 = arith.constant 0 : index
    %c0_3 = arith.constant 0 : index
    %1 = vector.load %arg2[%c0_1, %c0_2, %c0_3] : memref<1x16x64xf32, #tpu.memory_space<vmem>>, vector<1x16x64xf32>
    %2 = vector.shape_cast %1 : vector<1x16x64xf32> to vector<16x64xf32>
    %cst = arith.constant dense<0.000000e+00> : vector<8x64xf32>
    %3 = tpu.matmul %0, %2, %cst {dimension_numbers = #tpu.dot_dimension_numbers<[1], [0], [0], [1], [0, 0, 1, 1], [], []>} : vector<8x16xf32>, vector<16x64xf32>, vector<8x64xf32> -> vector<8x64xf32>
    %c0_4 = arith.constant 0 : index
    %c0_5 = arith.constant 0 : index
    %4 = vector.load %arg5[%c0_4, %c0_5] : memref<8x1xf32, #tpu.memory_space<vmem>>, vector<8x1xf32>
    %5 = vector.broadcast %4 : vector<8x1xf32> to vector<8x64xf32>
    %6 = arith.addf %3, %5 : vector<8x64xf32>
    %c0_6 = arith.constant 0 : index
    %c0_7 = arith.constant 0 : index
    %7 = vector.load %arg9[%c0_6, %c0_7] : memref<8x64xf32, #tpu.memory_space<vmem>>, vector<8x64xf32>
    tpu.vector_store %arg9[%c0_6, %c0_7], %6 {strides = array<i32>} : memref<8x64xf32, #tpu.memory_space<vmem>>, vector<8x64xf32>,
    %c0_8 = arith.constant 0 : index
    %c0_9 = arith.constant 0 : index
    %8 = vector.load %arg9[%c0_8, %c0_9] : memref<8x64xf32, #tpu.memory_space<vmem>>, vector<8x8xf32>
    %c0_10 = arith.constant 0 : index
    %c0_11 = arith.constant 0 : index
    %c0_12 = arith.constant 0 : index
    %9 = vector.load %arg10[%c0_10, %c0_11, %c0_12] : memref<8x8x8xf32, #tpu.memory_space<vmem>>, vector<8x1x8xf32>
    %10 = vector.shape_cast %9 : vector<8x1x8xf32> to vector<8x8xf32>
    %11 = vector.shape_cast %8 : vector<8x8xf32> to vector<8x1x8xf32>
    tpu.vector_store %arg10[%c0_10, %c0_11, %c0_12], %11 {strides = array<i32>} : memref<8x8x8xf32, #tpu.memory_space<vmem>>, vector<8x1x8xf32>,
    %c0_13 = arith.constant 0 : index
    %c8 = arith.constant 8 : index
    %12 = vector.load %arg9[%c0_13, %c8] : memref<8x64xf32, #tpu.memory_space<vmem>>, vector<8x8xf32>
    %c0_14 = arith.constant 0 : index
    %c1 = arith.constant 1 : index
    %c0_15 = arith.constant 0 : index
    %13 = vector.load %arg10[%c0_14, %c1, %c0_15] : memref<8x8x8xf32, #tpu.memory_space<vmem>>, vector<8x1x8xf32>
    %14 = vector.shape_cast %13 : vector<8x1x8xf32> to vector<8x8xf32>
    %15 = vector.shape_cast %12 : vector<8x8xf32> to vector<8x1x8xf32>
    tpu.vector_store %arg10[%c0_14, %c1, %c0_15], %15 {strides = array<i32>} : memref<8x8x8xf32, #tpu.memory_space<vmem>>, vector<8x1x8xf32>,
    %c0_16 = arith.constant 0 : index
    %c16 = arith.constant 16 : index
    %16 = vector.load %arg9[%c0_16, %c16] : memref<8x64xf32, #tpu.memory_space<vmem>>, vector<8x8xf32>
    %c0_17 = arith.constant 0 : index
    %c2 = arith.constant 2 : index
    %c0_18 = arith.constant 0 : index
    %17 = vector.load %arg10[%c0_17, %c2, %c0_18] : memref<8x8x8xf32, #tpu.memory_space<vmem>>, vector<8x1x8xf32>
    %18 = vector.shape_cast %17 : vector<8x1x8xf32> to vector<8x8xf32>
    %19 = vector.shape_cast %16 : vector<8x8xf32> to vector<8x1x8xf32>
    tpu.vector_store %arg10[%c0_17, %c2, %c0_18], %19 {strides = array<i32>} : memref<8x8x8xf32, #tpu.memory_space<vmem>>, vector<8x1x8xf32>,
    %c0_19 = arith.constant 0 : index
    %c24 = arith.constant 24 : index
    %20 = vector.load %arg9[%c0_19, %c24] : memref<8x64xf32, #tpu.memory_space<vmem>>, vector<8x8xf32>
    %c0_20 = arith.constant 0 : index
    %c3 = arith.constant 3 : index
    %c0_21 = arith.constant 0 : index
    %21 = vector.load %arg10[%c0_20, %c3, %c0_21] : memref<8x8x8xf32, #tpu.memory_space<vmem>>, vector<8x1x8xf32>
    %22 = vector.shape_cast %21 : vector<8x1x8xf32> to vector<8x8xf32>
    %23 = vector.shape_cast %20 : vector<8x8xf32> to vector<8x1x8xf32>
    tpu.vector_store %arg10[%c0_20, %c3, %c0_21], %23 {strides = array<i32>} : memref<8x8x8xf32, #tpu.memory_space<vmem>>, vector<8x1x8xf32>,
    %c0_22 = arith.constant 0 : index
    %c32 = arith.constant 32 : index
    %24 = vector.load %arg9[%c0_22, %c32] : memref<8x64xf32, #tpu.memory_space<vmem>>, vector<8x8xf32>
    %c0_23 = arith.constant 0 : index
    %c4 = arith.constant 4 : index
    %c0_24 = arith.constant 0 : index
    %25 = vector.load %arg10[%c0_23, %c4, %c0_24] : memref<8x8x8xf32, #tpu.memory_space<vmem>>, vector<8x1x8xf32>
    %26 = vector.shape_cast %25 : vector<8x1x8xf32> to vector<8x8xf32>
    %27 = vector.shape_cast %24 : vector<8x8xf32> to vector<8x1x8xf32>
    tpu.vector_store %arg10[%c0_23, %c4, %c0_24], %27 {strides = array<i32>} : memref<8x8x8xf32, #tpu.memory_space<vmem>>, vector<8x1x8xf32>,
    %c0_25 = arith.constant 0 : index
    %c40 = arith.constant 40 : index
    %28 = vector.load %arg9[%c0_25, %c40] : memref<8x64xf32, #tpu.memory_space<vmem>>, vector<8x8xf32>
    %c0_26 = arith.constant 0 : index
    %c5 = arith.constant 5 : index
    %c0_27 = arith.constant 0 : index
    %29 = vector.load %arg10[%c0_26, %c5, %c0_27] : memref<8x8x8xf32, #tpu.memory_space<vmem>>, vector<8x1x8xf32>
    %30 = vector.shape_cast %29 : vector<8x1x8xf32> to vector<8x8xf32>
    %31 = vector.shape_cast %28 : vector<8x8xf32> to vector<8x1x8xf32>
    tpu.vector_store %arg10[%c0_26, %c5, %c0_27], %31 {strides = array<i32>} : memref<8x8x8xf32, #tpu.memory_space<vmem>>, vector<8x1x8xf32>,
    %c0_28 = arith.constant 0 : index
    %c48 = arith.constant 48 : index
    %32 = vector.load %arg9[%c0_28, %c48] : memref<8x64xf32, #tpu.memory_space<vmem>>, vector<8x8xf32>
    %c0_29 = arith.constant 0 : index
    %c6 = arith.constant 6 : index
    %c0_30 = arith.constant 0 : index
    %33 = vector.load %arg10[%c0_29, %c6, %c0_30] : memref<8x8x8xf32, #tpu.memory_space<vmem>>, vector<8x1x8xf32>
    %34 = vector.shape_cast %33 : vector<8x1x8xf32> to vector<8x8xf32>
    %35 = vector.shape_cast %32 : vector<8x8xf32> to vector<8x1x8xf32>
    tpu.vector_store %arg10[%c0_29, %c6, %c0_30], %35 {strides = array<i32>} : memref<8x8x8xf32, #tpu.memory_space<vmem>>, vector<8x1x8xf32>,
    %c0_31 = arith.constant 0 : index
    %c56 = arith.constant 56 : index
    %36 = vector.load %arg9[%c0_31, %c56] : memref<8x64xf32, #tpu.memory_space<vmem>>, vector<8x8xf32>
    %c0_32 = arith.constant 0 : index
    %c7 = arith.constant 7 : index
    %c0_33 = arith.constant 0 : index
    %37 = vector.load %arg10[%c0_32, %c7, %c0_33] : memref<8x8x8xf32, #tpu.memory_space<vmem>>, vector<8x1x8xf32>
    %38 = vector.shape_cast %37 : vector<8x1x8xf32> to vector<8x8xf32>
    %39 = vector.shape_cast %36 : vector<8x8xf32> to vector<8x1x8xf32>
    tpu.vector_store %arg10[%c0_32, %c7, %c0_33], %39 {strides = array<i32>} : memref<8x8x8xf32, #tpu.memory_space<vmem>>, vector<8x1x8xf32>,
    %c0_34 = arith.constant 0 : index
    %c0_35 = arith.constant 0 : index
    %c0_36 = arith.constant 0 : index
    %40 = vector.load %arg10[%c0_34, %c0_35, %c0_36] : memref<8x8x8xf32, #tpu.memory_space<vmem>>, vector<8x8x8xf32>
    %c0_37 = arith.constant 0 : index
    %c0_38 = arith.constant 0 : index
    %41 = vector.load %arg7[%c0_37, %c0_38] : memref<8x16xf32, #tpu.memory_space<vmem>>, vector<8x16xf32>
    %42 = vector.shape_cast %41 : vector<8x16xf32> to vector<1x8x16xf32>
    %43 = vector.broadcast %42 : vector<1x8x16xf32> to vector<8x8x16xf32>
    %cst_39 = arith.constant dense<0.000000e+00> : vector<8x8x16xf32>
    %44 = tpu.matmul %40, %43, %cst_39 {dimension_numbers = #tpu.dot_dimension_numbers<[2], [1], [1], [2], [0, 0, 0, 1, 1, 2], [0], [0]>} : vector<8x8x8xf32>, vector<8x8x16xf32>, vector<8x8x16xf32> -> vector<8x8x16xf32>
    %c0_40 = arith.constant 0 : index
    %c0_41 = arith.constant 0 : index
    %45 = vector.load %arg6[%c0_40, %c0_41] : memref<16x8xf32, #tpu.memory_space<vmem>>, vector<16x8xf32>
    %46 = vector.shape_cast %45 : vector<16x8xf32> to vector<1x16x8xf32>
    %47 = vector.broadcast %46 : vector<1x16x8xf32> to vector<8x16x8xf32>
    %cst_42 = arith.constant dense<0.000000e+00> : vector<8x16x16xf32>
    %48 = tpu.matmul %47, %44, %cst_42 {dimension_numbers = #tpu.dot_dimension_numbers<[2], [1], [1], [2], [0, 0, 0, 1, 1, 2], [0], [0]>} : vector<8x16x8xf32>, vector<8x8x16xf32>, vector<8x16x16xf32> -> vector<8x16x16xf32>
    %c0_43 = arith.constant 0 : index
    %c0_44 = arith.constant 0 : index
    %c0_45 = arith.constant 0 : index
    %c0_46 = arith.constant 0 : index
    %49 = vector.load %arg3[%c0_43, %c0_44, %c0_45, %c0_46] : memref<1x8x16x16xf32, #tpu.memory_space<vmem>>, vector<1x8x16x16xf32>
    %50 = vector.shape_cast %49 : vector<1x8x16x16xf32> to vector<8x16x16xf32>
    %51 = arith.addf %48, %50 : vector<8x16x16xf32>
    %cst_47 = arith.constant 0.000000e+00 : f32
    %52 = vector.broadcast %cst_47 : f32 to vector<8x16x16xf32>
    %53 = arith.maximumf %51, %52 : vector<8x16x16xf32>
    %c0_48 = arith.constant 0 : index
    %c0_49 = arith.constant 0 : index
    %c0_50 = arith.constant 0 : index
    %c0_51 = arith.constant 0 : index
    %54 = vector.load %arg8[%c0_48, %c0_49, %c0_50, %c0_51] : memref<1x8x16x16xf32, #tpu.memory_space<vmem>>, vector<1x8x16x16xf32>
    %55 = vector.shape_cast %54 : vector<1x8x16x16xf32> to vector<8x16x16xf32>
    %56 = vector.shape_cast %53 : vector<8x16x16xf32> to vector<1x8x16x16xf32>
    tpu.vector_store %arg8[%c0_48, %c0_49, %c0_50, %c0_51], %56 {strides = array<i32>} : memref<1x8x16x16xf32, #tpu.memory_space<vmem>>, vector<1x8x16x16xf32>,
    return
  }
  func.func @transform_0(%arg0: i32, %arg1: i32) -> (i32, i32, i32) {
    %c0_i32 = arith.constant 0 : i32
    %c0_i32_0 = arith.constant 0 : i32
    %c0_i32_1 = arith.constant 0 : i32
    return %arg0, %c0_i32, %c0_i32_0 : i32, i32, i32
  }
  func.func @transform_1(%arg0: i32, %arg1: i32) -> (i32, i32, i32, i32) {
    %c0_i32 = arith.constant 0 : i32
    %c0_i32_0 = arith.constant 0 : i32
    %c0_i32_1 = arith.constant 0 : i32
    return %arg0, %arg1, %c0_i32, %c0_i32_0 : i32, i32, i32, i32
  }
  func.func @transform_2(%arg0: i32, %arg1: i32) -> (i32, i32) {
    %c0_i32 = arith.constant 0 : i32
    %c0_i32_0 = arith.constant 0 : i32
    return %arg1, %c0_i32 : i32, i32
  }
  func.func @transform_3(%arg0: i32, %arg1: i32) -> (i32, i32) {
    %c0_i32 = arith.constant 0 : i32
    %c0_i32_0 = arith.constant 0 : i32
    return %arg1, %c0_i32 : i32, i32
  }
  func.func @transform_4(%arg0: i32, %arg1: i32) -> (i32, i32) {
    %c0_i32 = arith.constant 0 : i32
    %c0_i32_0 = arith.constant 0 : i32
    %c0_i32_1 = arith.constant 0 : i32
    return %c0_i32, %c0_i32_0 : i32, i32
  }
  func.func @transform_5(%arg0: i32, %arg1: i32) -> (i32, i32) {
    %c0_i32 = arith.constant 0 : i32
    %c0_i32_0 = arith.constant 0 : i32
    %c0_i32_1 = arith.constant 0 : i32
    return %c0_i32, %c0_i32_0 : i32, i32
  }
  func.func @transform_6(%arg0: i32, %arg1: i32) -> (i32, i32, i32, i32) {
    %c0_i32 = arith.constant 0 : i32
    %c0_i32_0 = arith.constant 0 : i32
    %c0_i32_1 = arith.constant 0 : i32
    return %arg0, %arg1, %c0_i32, %c0_i32_0 : i32, i32, i32, i32
  }
}

</mosaic_0001>

<llo_original>
// kernel: _merge_forward.1
$region0: #{_merge_forward.1}
  #allocation0 [shape = 'u32[]', space=smem, size = 0x4, offset = 0x4, fixed_abs, tag = 'smem constant byte address 0x4 - core index']
  #allocation1 [shape = 'u32[72,128]{1,0:T(1,128)}', space=vmem, size = 0x9000, scoped, tag = 'internal scratch']
  #allocation2 [shape = 'f32[8,64]{1,0:T(8,128)}', space=vmem, size = 0x1000, scoped, tag = 'scratch operand']
  #allocation3 [shape = 'f32[8,8,8]{2,1,0:T(8,128)}', space=vmem, size = 0x8000, scoped, tag = 'scratch operand']
  %s0 = inlined_call_operand.vmem [shape: f32[2,16,64], index: 0, kind: input, shape index: {}]
  %s1 = inlined_call_operand.hbm [shape: f32[2,8,16,16], index: 1, kind: input, shape index: {}]
  %s2 = inlined_call_operand.vmem [shape: f32[8,16], index: 2, kind: input, shape index: {}]
  %s3 = inlined_call_operand.vmem [shape: f32[8,1], index: 3, kind: input, shape index: {}]
  %s4 = inlined_call_operand.vmem [shape: f32[16,8], index: 4, kind: input, shape index: {}]
  %s5 = inlined_call_operand.vmem [shape: f32[8,16], index: 5, kind: input, shape index: {}]
  %s6 = inlined_call_operand.hbm [shape: f32[2,8,16,16], index: 6, kind: output, shape index: {}]
  %s7 = sld [smem:[#allocation0]]
  $region61: #{_merge_forward.1} parent=0
    _
  %s9 = ssub.s32 1, %s7
  %s10 = scalar_select 0, %s9, %s7
  $region1: #{_merge_forward.1} parent=0
    #allocation4 [shape = 'u8[131072]{0}', space=vmem, size = 0x20000, scoped, tag = 'input window, operand 1']
    #allocation5 [shape = 's32[2]{0}', space=sflag, size = 0x8, scoped, tag = 'scoped memory for _merge_forward.1']
    #allocation6 [shape = 's32[2]{0}', space=sflag, size = 0x8, scoped, tag = 'scoped memory for _merge_forward.1']
    #allocation7 [shape = 'u8[131072]{0}', space=vmem, size = 0x20000, scoped, tag = 'output window, operand 0']
    %11 = vsyncpa [#allocation5], 0
    %s12 = scalar_lea.sflag [#allocation5], 1
    %13 = vsyncpa %s12, 0
    %14 = vsyncpa [#allocation6], 0
    %s15 = scalar_lea.sflag [#allocation6], 1
    %16 = vsyncpa %s15, 0
    loop: start=0, step=1, limit=4
    $region2: #{_merge_forward.1} parent=1 // loop_pre_header
      _
    $region3: #{_merge_forward.1} parent=1 // loop_header
      %s18 = sphi 0, %s22
      %p19 = scmp.ge.s32.totalorder %s18, 4
      %s25 = sphi 0, %s37
      %s26 = sphi 0, %s33
      %s27 = sphi 0, %s25
      %s28 = sphi 0, %s26
      %s29 = sphi 0, %s27
      %s30 = sphi 0, %s28
      %s40 = sphi 0, %s42
      %s43 = sphi 0, %s40
      %s44 = sphi 0, %s43
      %s60 = sphi 0, %s44
      %s68 = sphi 0, %s70
      %s71 = sphi 0, %s68
      %s72 = sphi 0, %s71
      %s88 = sphi 0, %s72
      %s94 = sphi 0, %s96
      %s97 = sphi 0, %s94
      %s98 = sphi 0, %s97
      %s114 = sphi 0, %s98
      %s120 = sphi 0, %s122
      %s123 = sphi 0, %s120
      %s124 = sphi 0, %s123
      %s140 = sphi 0, %s124
      %s144 = sphi 0, %s144
      %s146 = sphi 0, %s144
      %s147 = sphi 0, %s146
      %s161 = sphi 0, %s147
      %s165 = sphi 0, %s165
      %s167 = sphi 0, %s165
      %s168 = sphi 0, %s167
      %s182 = sphi 0, %s168
      %s190 = sphi 0, %s192
      %s193 = sphi 0, %s190
      %s194 = sphi 0, %s193
      %s210 = sphi 0, %s194
    $region4: #{_merge_forward.1} parent=1 // loop_header_branch
      %21 = sbr.rel (%p19) target = $region8
    $region5: #{_merge_forward.1} parent=1 // loop_body
      %s23 = ssub.s32 %s18, 1
      %s24 = ssub.s32 %s18, 2
      %s31 = sadd.s32 1, %s26
      %p32 = scmp.ge.s32.totalorder %s31, 1
      %s33 = scalar_select %p32, 0, %s31
      %s34 = sadd.s32 1, %s25
      %s35 = scalar_select %p32, %s34, %s25
      %p36 = scmp.ge.s32.totalorder %s35, 2
      %s37 = scalar_select %p36, 0, %s35
      %s38 = ssub.s32 %s25, %s37
      %p39 = scmp.eq.s32.totalorder %s38, 0
      %s41 = sadd.s32 %s40, 1
      %s42 = scalar_select %p39, %s40, %s41
      %p45 = pneg %p39
      %p46 = scmp.eq.s32.totalorder %s18, 1
      %p47 = por %p45, %p46
      %p48 = scmp.ne.s32.totalorder %s40, %s43
      %p49 = scmp.eq.s32.totalorder %s18, 0
      %p50 = por %p48, %p49
      %p51 = scmp.ne.s32.totalorder %s40, %s43
      %p52 = scmp.eq.s32.totalorder %s23, 1
      %p53 = por %p51, %p52
      %p54 = scmp.ne.s32.totalorder %s43, %s44
      %p55 = scmp.eq.s32.totalorder %s23, 0
      %p56 = por %p54, %p55
      %p57 = scmp.ne.s32.totalorder %s43, %s44
      %p58 = scmp.eq.s32.totalorder %s24, 1
      %p59 = por %p57, %p58
      %p61 = scmp.ne.s32.totalorder %s44, %s60
      %p62 = scmp.eq.s32.totalorder %s24, 0
      %p63 = por %p61, %p62
      %s64 = ssub.s32 %s25, %s37
      %s65 = ssub.s32 %s26, %s33
      %s66 = sor.u32 %s64, %s65
      %p67 = scmp.eq.s32.totalorder %s66, 0
      %s69 = sadd.s32 %s68, 1
      %s70 = scalar_select %p67, %s68, %s69
      %p73 = pneg %p67
      %p74 = scmp.eq.s32.totalorder %s18, 1
      %p75 = por %p73, %p74
      %p76 = scmp.ne.s32.totalorder %s68, %s71
      %p77 = scmp.eq.s32.totalorder %s18, 0
      %p78 = por %p76, %p77
      %p79 = scmp.ne.s32.totalorder %s68, %s71
      %p80 = scmp.eq.s32.totalorder %s23, 1
      %p81 = por %p79, %p80
      %p82 = scmp.ne.s32.totalorder %s71, %s72
      %p83 = scmp.eq.s32.totalorder %s23, 0
      %p84 = por %p82, %p83
      %p85 = scmp.ne.s32.totalorder %s71, %s72
      %p86 = scmp.eq.s32.totalorder %s24, 1
      %p87 = por %p85, %p86
      %p89 = scmp.ne.s32.totalorder %s72, %s88
      %p90 = scmp.eq.s32.totalorder %s24, 0
      %p91 = por %p89, %p90
      %s92 = ssub.s32 %s26, %s33
      %p93 = scmp.eq.s32.totalorder %s92, 0
      %s95 = sadd.s32 %s94, 1
      %s96 = scalar_select %p93, %s94, %s95
      %p99 = pneg %p93
      %p100 = scmp.eq.s32.totalorder %s18, 1
      %p101 = por %p99, %p100
      %p102 = scmp.ne.s32.totalorder %s94, %s97
      %p103 = scmp.eq.s32.totalorder %s18, 0
      %p104 = por %p102, %p103
      %p105 = scmp.ne.s32.totalorder %s94, %s97
      %p106 = scmp.eq.s32.totalorder %s23, 1
      %p107 = por %p105, %p106
      %p108 = scmp.ne.s32.totalorder %s97, %s98
      %p109 = scmp.eq.s32.totalorder %s23, 0
      %p110 = por %p108, %p109
      %p111 = scmp.ne.s32.totalorder %s97, %s98
      %p112 = scmp.eq.s32.totalorder %s24, 1
      %p113 = por %p111, %p112
      %p115 = scmp.ne.s32.totalorder %s98, %s114
      %p116 = scmp.eq.s32.totalorder %s24, 0
      %p117 = por %p115, %p116
      %s118 = ssub.s32 %s26, %s33
      %p119 = scmp.eq.s32.totalorder %s118, 0
      %s121 = sadd.s32 %s120, 1
      %s122 = scalar_select %p119, %s120, %s121
      %p125 = pneg %p119
      %p126 = scmp.eq.s32.totalorder %s18, 1
      %p127 = por %p125, %p126
      %p128 = scmp.ne.s32.totalorder %s120, %s123
      %p129 = scmp.eq.s32.totalorder %s18, 0
      %p130 = por %p128, %p129
      %p131 = scmp.ne.s32.totalorder %s120, %s123
      %p132 = scmp.eq.s32.totalorder %s23, 1
      %p133 = por %p131, %p132
      %p134 = scmp.ne.s32.totalorder %s123, %s124
      %p135 = scmp.eq.s32.totalorder %s23, 0
      %p136 = por %p134, %p135
      %p137 = scmp.ne.s32.totalorder %s123, %s124
      %p138 = scmp.eq.s32.totalorder %s24, 1
      %p139 = por %p137, %p138
      %p141 = scmp.ne.s32.totalorder %s124, %s140
      %p142 = scmp.eq.s32.totalorder %s24, 0
      %p143 = por %p141, %p142
      %s145 = sadd.s32 %s144, 1
      %p148 = scmp.eq.s32.totalorder %s18, 1
      %p149 = scmp.ne.s32.totalorder %s144, %s146
      %p150 = scmp.eq.s32.totalorder %s18, 0
      %p151 = por %p149, %p150
      %p152 = scmp.ne.s32.totalorder %s144, %s146
      %p153 = scmp.eq.s32.totalorder %s23, 1
      %p154 = por %p152, %p153
      %p155 = scmp.ne.s32.totalorder %s146, %s147
      %p156 = scmp.eq.s32.totalorder %s23, 0
      %p157 = por %p155, %p156
      %p158 = scmp.ne.s32.totalorder %s146, %s147
      %p159 = scmp.eq.s32.totalorder %s24, 1
      %p160 = por %p158, %p159
      %p162 = scmp.ne.s32.totalorder %s147, %s161
      %p163 = scmp.eq.s32.totalorder %s24, 0
      %p164 = por %p162, %p163
      %s166 = sadd.s32 %s165, 1
      %p169 = scmp.eq.s32.totalorder %s18, 1
      %p170 = scmp.ne.s32.totalorder %s165, %s167
      %p171 = scmp.eq.s32.totalorder %s18, 0
      %p172 = por %p170, %p171
      %p173 = scmp.ne.s32.totalorder %s165, %s167
      %p174 = scmp.eq.s32.totalorder %s23, 1
      %p175 = por %p173, %p174
      %p176 = scmp.ne.s32.totalorder %s167, %s168
      %p177 = scmp.eq.s32.totalorder %s23, 0
      %p178 = por %p176, %p177
      %p179 = scmp.ne.s32.totalorder %s167, %s168
      %p180 = scmp.eq.s32.totalorder %s24, 1
      %p181 = por %p179, %p180
      %p183 = scmp.ne.s32.totalorder %s168, %s182
      %p184 = scmp.eq.s32.totalorder %s24, 0
      %p185 = por %p183, %p184
      %s186 = ssub.s32 %s25, %s37
      %s187 = ssub.s32 %s26, %s33
      %s188 = sor.u32 %s186, %s187
      %p189 = scmp.eq.s32.totalorder %s188, 0
      %s191 = sadd.s32 %s190, 1
      %s192 = scalar_select %p189, %s190, %s191
      %p195 = pneg %p189
      %p196 = scmp.eq.s32.totalorder %s18, 1
      %p197 = por %p195, %p196
      %p198 = scmp.ne.s32.totalorder %s190, %s193
      %p199 = scmp.eq.s32.totalorder %s18, 0
      %p200 = por %p198, %p199
      %p201 = scmp.ne.s32.totalorder %s190, %s193
      %p202 = scmp.eq.s32.totalorder %s23, 1
      %p203 = por %p201, %p202
      %p204 = scmp.ne.s32.totalorder %s193, %s194
      %p205 = scmp.eq.s32.totalorder %s23, 0
      %p206 = por %p204, %p205
      %p207 = scmp.ne.s32.totalorder %s193, %s194
      %p208 = scmp.eq.s32.totalorder %s24, 1
      %p209 = por %p207, %p208
      %p211 = scmp.ne.s32.totalorder %s194, %s210
      %p212 = scmp.eq.s32.totalorder %s24, 0
      %p213 = por %p211, %p212
      %p214 = scmp.le.s32.totalorder 1, %s18
      %p215 = scmp.lt.s32.totalorder %s18, 3
      %p216 = pnand %p214, %p215
      %p217 = pneg %p216
      // Predicated region
      $region9: #{_merge_forward.1} parent=5 // pred_check
        _
      $region10: #{_merge_forward.1} parent=5 // pred_check_branch
        %219 = sbr.rel (%p216) target = $region12
      $region11: #{_merge_forward.1} parent=5 // pred_region
        %s220 = ssub.s32 %s18, 1
        // Predicated region
        $region13: #{_merge_forward.1} parent=11 // pred_check
          %p221 = pneg %p110
        $region14: #{_merge_forward.1} parent=11 // pred_check_branch
          %223 = sbr.rel (%p221) target = $region16
        $region15: #{_merge_forward.1} parent=11 // pred_region
          %p224 = scmp.lt.s32.totalorder %s28, 0
          %s225 = scalar_select %p224, %s28, 0
          %s226 = smul.addr %s225, 8
          %s227 = scalar_lea.vmem %s2, %s226
        $region16: #{_merge_forward.1} parent=11 // pred_fallthru
          _
        // Predicated region
        $region17: #{_merge_forward.1} parent=11 // pred_check
          %p228 = pneg %p136
        $region18: #{_merge_forward.1} parent=11 // pred_check_branch
          %230 = sbr.rel (%p228) target = $region20
        $region19: #{_merge_forward.1} parent=11 // pred_region
          %p231 = scmp.lt.s32.totalorder %s28, 0
          %s232 = scalar_select %p231, %s28, 0
          %s233 = smul.addr %s232, 8
          %s234 = scalar_lea.vmem %s3, %s233
        $region20: #{_merge_forward.1} parent=11 // pred_fallthru
          _
        // Predicated region
        $region21: #{_merge_forward.1} parent=11 // pred_check
          %p235 = pneg %p157
        $region22: #{_merge_forward.1} parent=11 // pred_check_branch
          %237 = sbr.rel (%p235) target = $region24
        $region23: #{_merge_forward.1} parent=11 // pred_region
          _
        $region24: #{_merge_forward.1} parent=11 // pred_fallthru
          _
        // Predicated region
        $region25: #{_merge_forward.1} parent=11 // pred_check
          %p238 = pneg %p178
        $region26: #{_merge_forward.1} parent=11 // pred_check_branch
          %240 = sbr.rel (%p238) target = $region28
        $region27: #{_merge_forward.1} parent=11 // pred_region
          _
        $region28: #{_merge_forward.1} parent=11 // pred_fallthru
          _
      $region12: #{_merge_forward.1} parent=5 // pred_fallthru
        _
      %p241 = scmp.lt.s32.totalorder %s18, 2
      // Predicated region
      $region29: #{_merge_forward.1} parent=5 // pred_check
        %p242 = pneg %p241
      $region30: #{_merge_forward.1} parent=5 // pred_check_branch
        %244 = sbr.rel (%p242) target = $region32
      $region31: #{_merge_forward.1} parent=5 // pred_region
        // Predicated region
        $region33: #{_merge_forward.1} parent=31 // pred_check
          %p245 = pneg %p50
        $region34: #{_merge_forward.1} parent=31 // pred_check_branch
          %247 = sbr.rel (%p245) target = $region36
        $region35: #{_merge_forward.1} parent=31 // pred_region
          %p248 = scmp.lt.s32.totalorder %s25, 1
          %s249 = scalar_select %p248, %s25, 1
          %s250 = smul.addr %s249, 2
          %s251 = smul.addr %s250, 8
          %s252 = scalar_lea.vmem %s0, %s251
        $region36: #{_merge_forward.1} parent=31 // pred_fallthru
          _
        // Predicated region
        $region37: #{_merge_forward.1} parent=31 // pred_check
          %p253 = pneg %p78
        $region38: #{_merge_forward.1} parent=31 // pred_check_branch
          %255 = sbr.rel (%p253) target = $region40
        $region39: #{_merge_forward.1} parent=31 // pred_region
          %s256 = sand.u32 %s68, 1
          %s257 = scalar_lea.sflag [#allocation5], %s256
          %s258 = sand.u32 %s68, 1
          %s259 = smul.addr %s258, 128
          %s260 = scalar_lea.vmem [#allocation4], %s259
          %s261 = smul.u32 8, %s26
          %263 = vsyncadd %s257, 0
          %s264 = smul.addr %s261, 2
          %s265 = smul.addr %s25, 16
          %s266 = sadd.s32 %s264, %s265
          %s267 = smul.addr %s266, 8
          %s268 = scalar_lea.hbm %s1, %s267
          %s269 = sshll.u32 %s268, 4
          %s270 = int_to_ptr.hbm [resolvable:$true] %s269
          %s271 = sshll.u32 %s260, 4
          %s272 = int_to_ptr.vmem [resolvable:$true] %s271
          %277 = dma.hbm_to_vmem [thread:$0]  %s270, 2048, %s272, %s257, 128, 128, 8
        $region40: #{_merge_forward.1} parent=31 // pred_fallthru
          _
      $region32: #{_merge_forward.1} parent=5 // pred_fallthru
        _
      %p278 = scmp.le.s32.totalorder 1, %s18
      %p279 = scmp.lt.s32.totalorder %s18, 3
      %p280 = pnand %p278, %p279
      %p281 = pneg %p280
      // Predicated region
      $region41: #{_merge_forward.1} parent=5 // pred_check
        _
      $region42: #{_merge_forward.1} parent=5 // pred_check_branch
        %283 = sbr.rel (%p280) target = $region44
      $region43: #{_merge_forward.1} parent=5 // pred_region
        %s284 = ssub.s32 %s18, 1
        %s285 = sand.u32 %s71, 1
        %s286 = scalar_lea.sflag [#allocation5], %s285
        %s287 = sand.u32 %s71, 1
        %s288 = smul.addr %s287, 128
        %s289 = scalar_lea.vmem [#allocation4], %s288
        // Predicated region
        $region45: #{_merge_forward.1} parent=43 // pred_check
          %p290 = pneg %p84
        $region46: #{_merge_forward.1} parent=43 // pred_check_branch
          %292 = sbr.rel (%p290) target = $region48
        $region47: #{_merge_forward.1} parent=43 // pred_region
          %294 = dma.done %s286, 2048
        $region48: #{_merge_forward.1} parent=43 // pred_fallthru
          _
        %p295 = scmp.lt.s32.totalorder %s27, 1
        %s296 = scalar_select %p295, %s27, 1
        %s297 = smul.addr %s296, 2
        %s298 = smul.addr %s297, 8
        %s299 = scalar_lea.vmem %s0, %s298
        %p300 = pneg %p56
        %p301 = pneg %p53
        %s302 = sand.u32 %s71, 1
        %s303 = scalar_lea.sflag [#allocation5], %s302
        %s304 = sand.u32 %s71, 1
        %s305 = smul.addr %s304, 128
        %s306 = scalar_lea.vmem [#allocation4], %s305
        %p307 = pneg %p84
        %p308 = pneg %p81
        %p309 = scmp.lt.s32.totalorder %s28, 0
        %s310 = scalar_select %p309, %s28, 0
        %s311 = smul.addr %s310, 8
        %s312 = scalar_lea.vmem %s2, %s311
        %p313 = pneg %p110
        %p314 = pneg %p107
        %p315 = scmp.lt.s32.totalorder %s28, 0
        %s316 = scalar_select %p315, %s28, 0
        %s317 = smul.addr %s316, 8
        %s318 = scalar_lea.vmem %s3, %s317
        %p319 = pneg %p136
        %p320 = pneg %p133
        %p321 = pneg %p157
        %p322 = pneg %p154
        %p323 = pneg %p178
        %p324 = pneg %p175
        %p325 = pneg %p206
        %p326 = pneg %p203
        %s327 = sand.u32 %s193, 1
        %s328 = scalar_lea.sflag [#allocation6], %s327
        %s329 = sand.u32 %s193, 1
        %s330 = smul.addr %s329, 128
        %s331 = scalar_lea.vmem [#allocation7], %s330
        %p332 = scmp.lt.s32.totalorder %s27, 1
        %s333 = scalar_select %p332, %s27, 1
        %s334 = smul.addr %s333, 2
        %s335 = smul.addr %s334, 8
        %s336 = scalar_lea.vmem %s0, %s335
        %s337 = smul.u32 8, %s28
        %p338 = scmp.lt.s32.totalorder %s28, 0
        %s339 = scalar_select %p338, %s28, 0
        %s340 = smul.addr %s339, 8
        %s341 = scalar_lea.vmem %s2, %s340
        %p342 = scmp.lt.s32.totalorder %s28, 0
        %s343 = scalar_select %p342, %s28, 0
        %s344 = smul.addr %s343, 8
        %s345 = scalar_lea.vmem %s3, %s344
        %s346 = smul.u32 8, %s28
        %v347 = vld [vmem:[%s341] sm:$0xff]
        %v348 = vld [vmem:[%s336] sm:$0xff]
        %v349 = vld [vmem:[%s336 + $0x8] sm:$0xff]
        %v350 = vld [vmem:[%s345] sm:$0xff]
        %352 = vset.pattern.permute.xlu0 0
        %353 = vperm.xlu0 %352, %v350
        %v354 = vpop.permute.xlu0 %353
        %vm356 = vcmask 130048
        %v358 = vsel %vm356, %v347, 0
        %360 = vmatpush.msra.mxu0 0.0
        %361 = vmatpush.msra.mxu0 0.0
        %362 = vmatpush.msra.mxu0 0.0
        %363 = vmatpush.msra.mxu0 0.0
        %364 = vmatpush.msra.mxu0 0.0
        %365 = vmatpush.msra.mxu0 0.0
        %366 = vmatpush.msra.mxu0 0.0
        %367 = vmatpush.msra.mxu0 0.0
        %368 = vmatpush.msra.mxu0 0.0
        %369 = vmatpush.msra.mxu0 0.0
        %370 = vmatpush.msra.mxu0 0.0
        %371 = vmatpush.msra.mxu0 0.0
        %372 = vmatpush.msra.mxu0 0.0
        %373 = vmatpush.msra.mxu0 0.0
        %374 = vmatpush.msra.mxu0 %v349
        %375 = vmatpush.msra.mxu0 %v348
        %376 = vmatmul.f32.gmra.mxu0 %v358
        %v377 = vpop.f32.mrf.mxu0
        %v378 = vadd.f32 %v354, %v377
        %379 = vdwg.mxu0
        %vm380 = vcmask 523264
        %381 = vst.msk [vmem:[#allocation2] sm:$0xff] %vm380, %v378
        %v382 = vld [vmem:[#allocation2] sm:$0xff]
        %v384 = vrot.slane %v382, 1
        %v385 = vrot.slane %v382, 2
        %v386 = vrot.slane %v382, 3
        %v387 = vrot.slane %v382, 4
        %v388 = vrot.slane %v382, 5
        %v389 = vrot.slane %v382, 6
        %v390 = vrot.slane %v382, 7
        %vm398 = vcmask 57344
        %399 = vst.msk [vmem:[#allocation3] sm:$0x1] %vm398, %v382
        %400 = vst.msk [vmem:[#allocation3 + $0x8] sm:$0x1] %vm398, %v384
        %401 = vst.msk [vmem:[#allocation3 + $0x10] sm:$0x1] %vm398, %v385
        %402 = vst.msk [vmem:[#allocation3 + $0x18] sm:$0x1] %vm398, %v386
        %403 = vst.msk [vmem:[#allocation3 + $0x20] sm:$0x1] %vm398, %v387
        %404 = vst.msk [vmem:[#allocation3 + $0x28] sm:$0x1] %vm398, %v388
        %405 = vst.msk [vmem:[#allocation3 + $0x30] sm:$0x1] %vm398, %v389
        %406 = vst.msk [vmem:[#allocation3 + $0x38] sm:$0x1] %vm398, %v390
        %v407 = vld [vmem:[#allocation2] sm:$0xff]
        %v409 = vrot.slane %v407, 1
        %v410 = vrot.slane %v407, 2
        %v411 = vrot.slane %v407, 3
        %v412 = vrot.slane %v407, 4
        %v413 = vrot.slane %v407, 5
        %v414 = vrot.slane %v407, 6
        %v415 = vrot.slane %v407, 7
        %v416 = vperm.slane %v407, 0
        %v417 = vperm.slane %v409, 0
        %v418 = vperm.slane %v410, 0
        %v419 = vperm.slane %v411, 0
        %v420 = vperm.slane %v412, 0
        %v421 = vperm.slane %v413, 0
        %v422 = vperm.slane %v414, 0
        %v423 = vperm.slane %v415, 0
        %424 = vrot.lane.b32.xlu0 %v416, 120
        %v425 = vpop.permute.xlu0 %424
        %426 = vrot.lane.b32.xlu0 %v417, 120
        %v427 = vpop.permute.xlu0 %426
        %428 = vrot.lane.b32.xlu0 %v418, 120
        %v429 = vpop.permute.xlu0 %428
        %430 = vrot.lane.b32.xlu0 %v419, 120
        %v431 = vpop.permute.xlu0 %430
        %432 = vrot.lane.b32.xlu0 %v420, 120
        %v433 = vpop.permute.xlu0 %432
        %434 = vrot.lane.b32.xlu0 %v421, 120
        %v435 = vpop.permute.xlu0 %434
        %436 = vrot.lane.b32.xlu0 %v422, 120
        %v437 = vpop.permute.xlu0 %436
        %438 = vrot.lane.b32.xlu0 %v423, 120
        %v439 = vpop.permute.xlu0 %438
        %448 = vst.msk [vmem:[#allocation3 + $0x1] sm:$0x1] %vm398, %v425
        %449 = vst.msk [vmem:[#allocation3 + $0x9] sm:$0x1] %vm398, %v427
        %450 = vst.msk [vmem:[#allocation3 + $0x11] sm:$0x1] %vm398, %v429
        %451 = vst.msk [vmem:[#allocation3 + $0x19] sm:$0x1] %vm398, %v431
        %452 = vst.msk [vmem:[#allocation3 + $0x21] sm:$0x1] %vm398, %v433
        %453 = vst.msk [vmem:[#allocation3 + $0x29] sm:$0x1] %vm398, %v435
        %454 = vst.msk [vmem:[#allocation3 + $0x31] sm:$0x1] %vm398, %v437
        %455 = vst.msk [vmem:[#allocation3 + $0x39] sm:$0x1] %vm398, %v439
        %v456 = vld [vmem:[#allocation2] sm:$0xff]
        %v458 = vrot.slane %v456, 1
        %v459 = vrot.slane %v456, 2
        %v460 = vrot.slane %v456, 3
        %v461 = vrot.slane %v456, 4
        %v462 = vrot.slane %v456, 5
        %v463 = vrot.slane %v456, 6
        %v464 = vrot.slane %v456, 7
        %v465 = vperm.slane %v456, 0
        %v466 = vperm.slane %v458, 0
        %v467 = vperm.slane %v459, 0
        %v468 = vperm.slane %v460, 0
        %v469 = vperm.slane %v461, 0
        %v470 = vperm.slane %v462, 0
        %v471 = vperm.slane %v463, 0
        %v472 = vperm.slane %v464, 0
        %473 = vrot.lane.b32.xlu0 %v465, 112
        %v474 = vpop.permute.xlu0 %473
        %475 = vrot.lane.b32.xlu0 %v466, 112
        %v476 = vpop.permute.xlu0 %475
        %477 = vrot.lane.b32.xlu0 %v467, 112
        %v478 = vpop.permute.xlu0 %477
        %479 = vrot.lane.b32.xlu0 %v468, 112
        %v480 = vpop.permute.xlu0 %479
        %481 = vrot.lane.b32.xlu0 %v469, 112
        %v482 = vpop.permute.xlu0 %481
        %483 = vrot.lane.b32.xlu0 %v470, 112
        %v484 = vpop.permute.xlu0 %483
        %485 = vrot.lane.b32.xlu0 %v471, 112
        %v486 = vpop.permute.xlu0 %485
        %487 = vrot.lane.b32.xlu0 %v472, 112
        %v488 = vpop.permute.xlu0 %487
        %497 = vst.msk [vmem:[#allocation3 + $0x2] sm:$0x1] %vm398, %v474
        %498 = vst.msk [vmem:[#allocation3 + $0xa] sm:$0x1] %vm398, %v476
        %499 = vst.msk [vmem:[#allocation3 + $0x12] sm:$0x1] %vm398, %v478
        %500 = vst.msk [vmem:[#allocation3 + $0x1a] sm:$0x1] %vm398, %v480
        %501 = vst.msk [vmem:[#allocation3 + $0x22] sm:$0x1] %vm398, %v482
        %502 = vst.msk [vmem:[#allocation3 + $0x2a] sm:$0x1] %vm398, %v484
        %503 = vst.msk [vmem:[#allocation3 + $0x32] sm:$0x1] %vm398, %v486
        %504 = vst.msk [vmem:[#allocation3 + $0x3a] sm:$0x1] %vm398, %v488
        %v505 = vld [vmem:[#allocation2] sm:$0xff]
        %v507 = vrot.slane %v505, 1
        %v508 = vrot.slane %v505, 2
        %v509 = vrot.slane %v505, 3
        %v510 = vrot.slane %v505, 4
        %v511 = vrot.slane %v505, 5
        %v512 = vrot.slane %v505, 6
        %v513 = vrot.slane %v505, 7
        %v514 = vperm.slane %v505, 0
        %v515 = vperm.slane %v507, 0
        %v516 = vperm.slane %v508, 0
        %v517 = vperm.slane %v509, 0
        %v518 = vperm.slane %v510, 0
        %v519 = vperm.slane %v511, 0
        %v520 = vperm.slane %v512, 0
        %v521 = vperm.slane %v513, 0
        %522 = vrot.lane.b32.xlu0 %v514, 104
        %v523 = vpop.permute.xlu0 %522
        %524 = vrot.lane.b32.xlu0 %v515, 104
        %v525 = vpop.permute.xlu0 %524
        %526 = vrot.lane.b32.xlu0 %v516, 104
        %v527 = vpop.permute.xlu0 %526
        %528 = vrot.lane.b32.xlu0 %v517, 104
        %v529 = vpop.permute.xlu0 %528
        %530 = vrot.lane.b32.xlu0 %v518, 104
        %v531 = vpop.permute.xlu0 %530
        %532 = vrot.lane.b32.xlu0 %v519, 104
        %v533 = vpop.permute.xlu0 %532
        %534 = vrot.lane.b32.xlu0 %v520, 104
        %v535 = vpop.permute.xlu0 %534
        %536 = vrot.lane.b32.xlu0 %v521, 104
        %v537 = vpop.permute.xlu0 %536
        %546 = vst.msk [vmem:[#allocation3 + $0x3] sm:$0x1] %vm398, %v523
        %547 = vst.msk [vmem:[#allocation3 + $0xb] sm:$0x1] %vm398, %v525
        %548 = vst.msk [vmem:[#allocation3 + $0x13] sm:$0x1] %vm398, %v527
        %549 = vst.msk [vmem:[#allocation3 + $0x1b] sm:$0x1] %vm398, %v529
        %550 = vst.msk [vmem:[#allocation3 + $0x23] sm:$0x1] %vm398, %v531
        %551 = vst.msk [vmem:[#allocation3 + $0x2b] sm:$0x1] %vm398, %v533
        %552 = vst.msk [vmem:[#allocation3 + $0x33] sm:$0x1] %vm398, %v535
        %553 = vst.msk [vmem:[#allocation3 + $0x3b] sm:$0x1] %vm398, %v537
        %v554 = vld [vmem:[#allocation2] sm:$0xff]
        %v556 = vrot.slane %v554, 1
        %v557 = vrot.slane %v554, 2
        %v558 = vrot.slane %v554, 3
        %v559 = vrot.slane %v554, 4
        %v560 = vrot.slane %v554, 5
        %v561 = vrot.slane %v554, 6
        %v562 = vrot.slane %v554, 7
        %v563 = vperm.slane %v554, 0
        %v564 = vperm.slane %v556, 0
        %v565 = vperm.slane %v557, 0
        %v566 = vperm.slane %v558, 0
        %v567 = vperm.slane %v559, 0
        %v568 = vperm.slane %v560, 0
        %v569 = vperm.slane %v561, 0
        %v570 = vperm.slane %v562, 0
        %571 = vrot.lane.b32.xlu0 %v563, 96
        %v572 = vpop.permute.xlu0 %571
        %573 = vrot.lane.b32.xlu0 %v564, 96
        %v574 = vpop.permute.xlu0 %573
        %575 = vrot.lane.b32.xlu0 %v565, 96
        %v576 = vpop.permute.xlu0 %575
        %577 = vrot.lane.b32.xlu0 %v566, 96
        %v578 = vpop.permute.xlu0 %577
        %579 = vrot.lane.b32.xlu0 %v567, 96
        %v580 = vpop.permute.xlu0 %579
        %581 = vrot.lane.b32.xlu0 %v568, 96
        %v582 = vpop.permute.xlu0 %581
        %583 = vrot.lane.b32.xlu0 %v569, 96
        %v584 = vpop.permute.xlu0 %583
        %585 = vrot.lane.b32.xlu0 %v570, 96
        %v586 = vpop.permute.xlu0 %585
        %595 = vst.msk [vmem:[#allocation3 + $0x4] sm:$0x1] %vm398, %v572
        %596 = vst.msk [vmem:[#allocation3 + $0xc] sm:$0x1] %vm398, %v574
        %597 = vst.msk [vmem:[#allocation3 + $0x14] sm:$0x1] %vm398, %v576
        %598 = vst.msk [vmem:[#allocation3 + $0x1c] sm:$0x1] %vm398, %v578
        %599 = vst.msk [vmem:[#allocation3 + $0x24] sm:$0x1] %vm398, %v580
        %600 = vst.msk [vmem:[#allocation3 + $0x2c] sm:$0x1] %vm398, %v582
        %601 = vst.msk [vmem:[#allocation3 + $0x34] sm:$0x1] %vm398, %v584
        %602 = vst.msk [vmem:[#allocation3 + $0x3c] sm:$0x1] %vm398, %v586
        %v603 = vld [vmem:[#allocation2] sm:$0xff]
        %v605 = vrot.slane %v603, 1
        %v606 = vrot.slane %v603, 2
        %v607 = vrot.slane %v603, 3
        %v608 = vrot.slane %v603, 4
        %v609 = vrot.slane %v603, 5
        %v610 = vrot.slane %v603, 6
        %v611 = vrot.slane %v603, 7
        %v612 = vperm.slane %v603, 0
        %v613 = vperm.slane %v605, 0
        %v614 = vperm.slane %v606, 0
        %v615 = vperm.slane %v607, 0
        %v616 = vperm.slane %v608, 0
        %v617 = vperm.slane %v609, 0
        %v618 = vperm.slane %v610, 0
        %v619 = vperm.slane %v611, 0
        %620 = vrot.lane.b32.xlu0 %v612, 88
        %v621 = vpop.permute.xlu0 %620
        %622 = vrot.lane.b32.xlu0 %v613, 88
        %v623 = vpop.permute.xlu0 %622
        %624 = vrot.lane.b32.xlu0 %v614, 88
        %v625 = vpop.permute.xlu0 %624
        %626 = vrot.lane.b32.xlu0 %v615, 88
        %v627 = vpop.permute.xlu0 %626
        %628 = vrot.lane.b32.xlu0 %v616, 88
        %v629 = vpop.permute.xlu0 %628
        %630 = vrot.lane.b32.xlu0 %v617, 88
        %v631 = vpop.permute.xlu0 %630
        %632 = vrot.lane.b32.xlu0 %v618, 88
        %v633 = vpop.permute.xlu0 %632
        %634 = vrot.lane.b32.xlu0 %v619, 88
        %v635 = vpop.permute.xlu0 %634
        %644 = vst.msk [vmem:[#allocation3 + $0x5] sm:$0x1] %vm398, %v621
        %645 = vst.msk [vmem:[#allocation3 + $0xd] sm:$0x1] %vm398, %v623
        %646 = vst.msk [vmem:[#allocation3 + $0x15] sm:$0x1] %vm398, %v625
        %647 = vst.msk [vmem:[#allocation3 + $0x1d] sm:$0x1] %vm398, %v627
        %648 = vst.msk [vmem:[#allocation3 + $0x25] sm:$0x1] %vm398, %v629
        %649 = vst.msk [vmem:[#allocation3 + $0x2d] sm:$0x1] %vm398, %v631
        %650 = vst.msk [vmem:[#allocation3 + $0x35] sm:$0x1] %vm398, %v633
        %651 = vst.msk [vmem:[#allocation3 + $0x3d] sm:$0x1] %vm398, %v635
        %v652 = vld [vmem:[#allocation2] sm:$0xff]
        %v654 = vrot.slane %v652, 1
        %v655 = vrot.slane %v652, 2
        %v656 = vrot.slane %v652, 3
        %v657 = vrot.slane %v652, 4
        %v658 = vrot.slane %v652, 5
        %v659 = vrot.slane %v652, 6
        %v660 = vrot.slane %v652, 7
        %v661 = vperm.slane %v652, 0
        %v662 = vperm.slane %v654, 0
        %v663 = vperm.slane %v655, 0
        %v664 = vperm.slane %v656, 0
        %v665 = vperm.slane %v657, 0
        %v666 = vperm.slane %v658, 0
        %v667 = vperm.slane %v659, 0
        %v668 = vperm.slane %v660, 0
        %669 = vrot.lane.b32.xlu0 %v661, 80
        %v670 = vpop.permute.xlu0 %669
        %671 = vrot.lane.b32.xlu0 %v662, 80
        %v672 = vpop.permute.xlu0 %671
        %673 = vrot.lane.b32.xlu0 %v663, 80
        %v674 = vpop.permute.xlu0 %673
        %675 = vrot.lane.b32.xlu0 %v664, 80
        %v676 = vpop.permute.xlu0 %675
        %677 = vrot.lane.b32.xlu0 %v665, 80
        %v678 = vpop.permute.xlu0 %677
        %679 = vrot.lane.b32.xlu0 %v666, 80
        %v680 = vpop.permute.xlu0 %679
        %681 = vrot.lane.b32.xlu0 %v667, 80
        %v682 = vpop.permute.xlu0 %681
        %683 = vrot.lane.b32.xlu0 %v668, 80
        %v684 = vpop.permute.xlu0 %683
        %693 = vst.msk [vmem:[#allocation3 + $0x6] sm:$0x1] %vm398, %v670
        %694 = vst.msk [vmem:[#allocation3 + $0xe] sm:$0x1] %vm398, %v672
        %695 = vst.msk [vmem:[#allocation3 + $0x16] sm:$0x1] %vm398, %v674
        %696 = vst.msk [vmem:[#allocation3 + $0x1e] sm:$0x1] %vm398, %v676
        %697 = vst.msk [vmem:[#allocation3 + $0x26] sm:$0x1] %vm398, %v678
        %698 = vst.msk [vmem:[#allocation3 + $0x2e] sm:$0x1] %vm398, %v680
        %699 = vst.msk [vmem:[#allocation3 + $0x36] sm:$0x1] %vm398, %v682
        %700 = vst.msk [vmem:[#allocation3 + $0x3e] sm:$0x1] %vm398, %v684
        %v701 = vld [vmem:[#allocation2] sm:$0xff]
        %v703 = vrot.slane %v701, 1
        %v704 = vrot.slane %v701, 2
        %v705 = vrot.slane %v701, 3
        %v706 = vrot.slane %v701, 4
        %v707 = vrot.slane %v701, 5
        %v708 = vrot.slane %v701, 6
        %v709 = vrot.slane %v701, 7
        %v710 = vperm.slane %v701, 0
        %v711 = vperm.slane %v703, 0
        %v712 = vperm.slane %v704, 0
        %v713 = vperm.slane %v705, 0
        %v714 = vperm.slane %v706, 0
        %v715 = vperm.slane %v707, 0
        %v716 = vperm.slane %v708, 0
        %v717 = vperm.slane %v709, 0
        %718 = vrot.lane.b32.xlu0 %v710, 72
        %v719 = vpop.permute.xlu0 %718
        %720 = vrot.lane.b32.xlu0 %v711, 72
        %v721 = vpop.permute.xlu0 %720
        %722 = vrot.lane.b32.xlu0 %v712, 72
        %v723 = vpop.permute.xlu0 %722
        %724 = vrot.lane.b32.xlu0 %v713, 72
        %v725 = vpop.permute.xlu0 %724
        %726 = vrot.lane.b32.xlu0 %v714, 72
        %v727 = vpop.permute.xlu0 %726
        %728 = vrot.lane.b32.xlu0 %v715, 72
        %v729 = vpop.permute.xlu0 %728
        %730 = vrot.lane.b32.xlu0 %v716, 72
        %v731 = vpop.permute.xlu0 %730
        %732 = vrot.lane.b32.xlu0 %v717, 72
        %v733 = vpop.permute.xlu0 %732
        %742 = vst.msk [vmem:[#allocation3 + $0x7] sm:$0x1] %vm398, %v719
        %743 = vst.msk [vmem:[#allocation3 + $0xf] sm:$0x1] %vm398, %v721
        %744 = vst.msk [vmem:[#allocation3 + $0x17] sm:$0x1] %vm398, %v723
        %745 = vst.msk [vmem:[#allocation3 + $0x1f] sm:$0x1] %vm398, %v725
        %746 = vst.msk [vmem:[#allocation3 + $0x27] sm:$0x1] %vm398, %v727
        %747 = vst.msk [vmem:[#allocation3 + $0x2f] sm:$0x1] %vm398, %v729
        %748 = vst.msk [vmem:[#allocation3 + $0x37] sm:$0x1] %vm398, %v731
        %749 = vst.msk [vmem:[#allocation3 + $0x3f] sm:$0x1] %vm398, %v733
        %v750 = vld [vmem:[#allocation3] sm:$0xff]
        %v751 = vld [vmem:[#allocation3 + $0x8] sm:$0xff]
        %v752 = vld [vmem:[#allocation3 + $0x10] sm:$0xff]
        %v753 = vld [vmem:[#allocation3 + $0x18] sm:$0xff]
        %v754 = vld [vmem:[#allocation3 + $0x20] sm:$0xff]
        %v755 = vld [vmem:[#allocation3 + $0x28] sm:$0xff]
        %v756 = vld [vmem:[#allocation3 + $0x30] sm:$0xff]
        %v757 = vld [vmem:[#allocation3 + $0x38] sm:$0xff]
        %v758 = vld [vmem:[%s5] sm:$0xff]
        %vm759 = vcmask 64512
        %v761 = vsel %vm759, %v750, 0
        %763 = vmatpush.msra.mxu0 0.0
        %764 = vmatpush.msra.mxu0 0.0
        %765 = vmatpush.msra.mxu0 0.0
        %766 = vmatpush.msra.mxu0 0.0
        %767 = vmatpush.msra.mxu0 0.0
        %768 = vmatpush.msra.mxu0 0.0
        %769 = vmatpush.msra.mxu0 0.0
        %770 = vmatpush.msra.mxu0 0.0
        %771 = vmatpush.msra.mxu0 0.0
        %772 = vmatpush.msra.mxu0 0.0
        %773 = vmatpush.msra.mxu0 0.0
        %774 = vmatpush.msra.mxu0 0.0
        %775 = vmatpush.msra.mxu0 0.0
        %776 = vmatpush.msra.mxu0 0.0
        %777 = vmatpush.msra.mxu0 0.0
        %778 = vmatpush.msra.mxu0 %v758
        %779 = vmatmul.f32.gmra.mxu0 %v761
        %v780 = vpop.f32.mrf.mxu0
        %v781 = vadd.f32 0.0, %v780
        %782 = vdwg.mxu0
        %v784 = vsel %vm759, %v751, 0
        %786 = vmatpush.msra.mxu0 0.0
        %787 = vmatpush.msra.mxu0 0.0
        %788 = vmatpush.msra.mxu0 0.0
        %789 = vmatpush.msra.mxu0 0.0
        %790 = vmatpush.msra.mxu0 0.0
        %791 = vmatpush.msra.mxu0 0.0
        %792 = vmatpush.msra.mxu0 0.0
        %793 = vmatpush.msra.mxu0 0.0
        %794 = vmatpush.msra.mxu0 0.0
        %795 = vmatpush.msra.mxu0 0.0
        %796 = vmatpush.msra.mxu0 0.0
        %797 = vmatpush.msra.mxu0 0.0
        %798 = vmatpush.msra.mxu0 0.0
        %799 = vmatpush.msra.mxu0 0.0
        %800 = vmatpush.msra.mxu0 0.0
        %801 = vmatpush.msra.mxu0 %v758
        %802 = vmatmul.f32.gmra.mxu0 %v784
        %v803 = vpop.f32.mrf.mxu0
        %v804 = vadd.f32 0.0, %v803
        %805 = vdwg.mxu0
        %v807 = vsel %vm759, %v752, 0
        %809 = vmatpush.msra.mxu0 0.0
        %810 = vmatpush.msra.mxu0 0.0
        %811 = vmatpush.msra.mxu0 0.0
        %812 = vmatpush.msra.mxu0 0.0
        %813 = vmatpush.msra.mxu0 0.0
        %814 = vmatpush.msra.mxu0 0.0
        %815 = vmatpush.msra.mxu0 0.0
        %816 = vmatpush.msra.mxu0 0.0
        %817 = vmatpush.msra.mxu0 0.0
        %818 = vmatpush.msra.mxu0 0.0
        %819 = vmatpush.msra.mxu0 0.0
        %820 = vmatpush.msra.mxu0 0.0
        %821 = vmatpush.msra.mxu0 0.0
        %822 = vmatpush.msra.mxu0 0.0
        %823 = vmatpush.msra.mxu0 0.0
        %824 = vmatpush.msra.mxu0 %v758
        %825 = vmatmul.f32.gmra.mxu0 %v807
        %v826 = vpop.f32.mrf.mxu0
        %v827 = vadd.f32 0.0, %v826
        %828 = vdwg.mxu0
        %v830 = vsel %vm759, %v753, 0
        %832 = vmatpush.msra.mxu0 0.0
        %833 = vmatpush.msra.mxu0 0.0
        %834 = vmatpush.msra.mxu0 0.0
        %835 = vmatpush.msra.mxu0 0.0
        %836 = vmatpush.msra.mxu0 0.0
        %837 = vmatpush.msra.mxu0 0.0
        %838 = vmatpush.msra.mxu0 0.0
        %839 = vmatpush.msra.mxu0 0.0
        %840 = vmatpush.msra.mxu0 0.0
        %841 = vmatpush.msra.mxu0 0.0
        %842 = vmatpush.msra.mxu0 0.0
        %843 = vmatpush.msra.mxu0 0.0
        %844 = vmatpush.msra.mxu0 0.0
        %845 = vmatpush.msra.mxu0 0.0
        %846 = vmatpush.msra.mxu0 0.0
        %847 = vmatpush.msra.mxu0 %v758
        %848 = vmatmul.f32.gmra.mxu0 %v830
        %v849 = vpop.f32.mrf.mxu0
        %v850 = vadd.f32 0.0, %v849
        %851 = vdwg.mxu0
        %v853 = vsel %vm759, %v754, 0
        %855 = vmatpush.msra.mxu0 0.0
        %856 = vmatpush.msra.mxu0 0.0
        %857 = vmatpush.msra.mxu0 0.0
        %858 = vmatpush.msra.mxu0 0.0
        %859 = vmatpush.msra.mxu0 0.0
        %860 = vmatpush.msra.mxu0 0.0
        %861 = vmatpush.msra.mxu0 0.0
        %862 = vmatpush.msra.mxu0 0.0
        %863 = vmatpush.msra.mxu0 0.0
        %864 = vmatpush.msra.mxu0 0.0
        %865 = vmatpush.msra.mxu0 0.0
        %866 = vmatpush.msra.mxu0 0.0
        %867 = vmatpush.msra.mxu0 0.0
        %868 = vmatpush.msra.mxu0 0.0
        %869 = vmatpush.msra.mxu0 0.0
        %870 = vmatpush.msra.mxu0 %v758
        %871 = vmatmul.f32.gmra.mxu0 %v853
        %v872 = vpop.f32.mrf.mxu0
        %v873 = vadd.f32 0.0, %v872
        %874 = vdwg.mxu0
        %v876 = vsel %vm759, %v755, 0
        %878 = vmatpush.msra.mxu0 0.0
        %879 = vmatpush.msra.mxu0 0.0
        %880 = vmatpush.msra.mxu0 0.0
        %881 = vmatpush.msra.mxu0 0.0
        %882 = vmatpush.msra.mxu0 0.0
        %883 = vmatpush.msra.mxu0 0.0
        %884 = vmatpush.msra.mxu0 0.0
        %885 = vmatpush.msra.mxu0 0.0
        %886 = vmatpush.msra.mxu0 0.0
        %887 = vmatpush.msra.mxu0 0.0
        %888 = vmatpush.msra.mxu0 0.0
        %889 = vmatpush.msra.mxu0 0.0
        %890 = vmatpush.msra.mxu0 0.0
        %891 = vmatpush.msra.mxu0 0.0
        %892 = vmatpush.msra.mxu0 0.0
        %893 = vmatpush.msra.mxu0 %v758
        %894 = vmatmul.f32.gmra.mxu0 %v876
        %v895 = vpop.f32.mrf.mxu0
        %v896 = vadd.f32 0.0, %v895
        %897 = vdwg.mxu0
        %v899 = vsel %vm759, %v756, 0
        %901 = vmatpush.msra.mxu0 0.0
        %902 = vmatpush.msra.mxu0 0.0
        %903 = vmatpush.msra.mxu0 0.0
        %904 = vmatpush.msra.mxu0 0.0
        %905 = vmatpush.msra.mxu0 0.0
        %906 = vmatpush.msra.mxu0 0.0
        %907 = vmatpush.msra.mxu0 0.0
        %908 = vmatpush.msra.mxu0 0.0
        %909 = vmatpush.msra.mxu0 0.0
        %910 = vmatpush.msra.mxu0 0.0
        %911 = vmatpush.msra.mxu0 0.0
        %912 = vmatpush.msra.mxu0 0.0
        %913 = vmatpush.msra.mxu0 0.0
        %914 = vmatpush.msra.mxu0 0.0
        %915 = vmatpush.msra.mxu0 0.0
        %916 = vmatpush.msra.mxu0 %v758
        %917 = vmatmul.f32.gmra.mxu0 %v899
        %v918 = vpop.f32.mrf.mxu0
        %v919 = vadd.f32 0.0, %v918
        %920 = vdwg.mxu0
        %v922 = vsel %vm759, %v757, 0
        %924 = vmatpush.msra.mxu0 0.0
        %925 = vmatpush.msra.mxu0 0.0
        %926 = vmatpush.msra.mxu0 0.0
        %927 = vmatpush.msra.mxu0 0.0
        %928 = vmatpush.msra.mxu0 0.0
        %929 = vmatpush.msra.mxu0 0.0
        %930 = vmatpush.msra.mxu0 0.0
        %931 = vmatpush.msra.mxu0 0.0
        %932 = vmatpush.msra.mxu0 0.0
        %933 = vmatpush.msra.mxu0 0.0
        %934 = vmatpush.msra.mxu0 0.0
        %935 = vmatpush.msra.mxu0 0.0
        %936 = vmatpush.msra.mxu0 0.0
        %937 = vmatpush.msra.mxu0 0.0
        %938 = vmatpush.msra.mxu0 0.0
        %939 = vmatpush.msra.mxu0 %v758
        %940 = vmatmul.f32.gmra.mxu0 %v922
        %v941 = vpop.f32.mrf.mxu0
        %v942 = vadd.f32 0.0, %v941
        %943 = vdwg.mxu0
        %v944 = vld [vmem:[%s4] sm:$0xff]
        %v945 = vld [vmem:[%s4 + $0x8] sm:$0xff]
        %v946 = vld [vmem:[%s289] sm:$0xff]
        %v947 = vld [vmem:[%s289 + $0x8] sm:$0xff]
        %v948 = vld [vmem:[%s289 + $0x10] sm:$0xff]
        %v949 = vld [vmem:[%s289 + $0x18] sm:$0xff]
        %v950 = vld [vmem:[%s289 + $0x20] sm:$0xff]
        %v951 = vld [vmem:[%s289 + $0x28] sm:$0xff]
        %v952 = vld [vmem:[%s289 + $0x30] sm:$0xff]
        %v953 = vld [vmem:[%s289 + $0x38] sm:$0xff]
        %v954 = vld [vmem:[%s289 + $0x40] sm:$0xff]
        %v955 = vld [vmem:[%s289 + $0x48] sm:$0xff]
        %v956 = vld [vmem:[%s289 + $0x50] sm:$0xff]
        %v957 = vld [vmem:[%s289 + $0x58] sm:$0xff]
        %v958 = vld [vmem:[%s289 + $0x60] sm:$0xff]
        %v959 = vld [vmem:[%s289 + $0x68] sm:$0xff]
        %v960 = vld [vmem:[%s289 + $0x70] sm:$0xff]
        %v961 = vld [vmem:[%s289 + $0x78] sm:$0xff]
        %v963 = vsel %vm759, %v944, 0
        %v966 = vsel %vm759, %v945, 0
        %968 = vmatpush.msra.mxu0 0.0
        %969 = vmatpush.msra.mxu0 0.0
        %970 = vmatpush.msra.mxu0 0.0
        %971 = vmatpush.msra.mxu0 0.0
        %972 = vmatpush.msra.mxu0 0.0
        %973 = vmatpush.msra.mxu0 0.0
        %974 = vmatpush.msra.mxu0 0.0
        %975 = vmatpush.msra.mxu0 0.0
        %976 = vmatpush.msra.mxu0 0.0
        %977 = vmatpush.msra.mxu0 0.0
        %978 = vmatpush.msra.mxu0 0.0
        %979 = vmatpush.msra.mxu0 0.0
        %980 = vmatpush.msra.mxu0 0.0
        %981 = vmatpush.msra.mxu0 0.0
        %982 = vmatpush.msra.mxu0 0.0
        %983 = vmatpush.msra.mxu0 %v781
        %984 = vmatmul.f32.gmra.mxu0 %v963
        %v985 = vpop.f32.mrf.mxu0
        %v986 = vadd.f32 %v946, %v985
        %987 = vmatmul.f32.gmra.mxu0 %v966
        %v988 = vpop.f32.mrf.mxu0
        %v989 = vadd.f32 %v947, %v988
        %990 = vdwg.mxu0
        %991 = vmatpush.msra.mxu0 0.0
        %992 = vmatpush.msra.mxu0 0.0
        %993 = vmatpush.msra.mxu0 0.0
        %994 = vmatpush.msra.mxu0 0.0
        %995 = vmatpush.msra.mxu0 0.0
        %996 = vmatpush.msra.mxu0 0.0
        %997 = vmatpush.msra.mxu0 0.0
        %998 = vmatpush.msra.mxu0 0.0
        %999 = vmatpush.msra.mxu0 0.0
        %1000 = vmatpush.msra.mxu0 0.0
        %1001 = vmatpush.msra.mxu0 0.0
        %1002 = vmatpush.msra.mxu0 0.0
        %1003 = vmatpush.msra.mxu0 0.0
        %1004 = vmatpush.msra.mxu0 0.0
        %1005 = vmatpush.msra.mxu0 0.0
        %1006 = vmatpush.msra.mxu0 %v804
        %1007 = vmatmul.f32.gmra.mxu0 %v963
        %v1008 = vpop.f32.mrf.mxu0
        %v1009 = vadd.f32 %v948, %v1008
        %1010 = vmatmul.f32.gmra.mxu0 %v966
        %v1011 = vpop.f32.mrf.mxu0
        %v1012 = vadd.f32 %v949, %v1011
        %1013 = vdwg.mxu0
        %1014 = vmatpush.msra.mxu0 0.0
        %1015 = vmatpush.msra.mxu0 0.0
        %1016 = vmatpush.msra.mxu0 0.0
        %1017 = vmatpush.msra.mxu0 0.0
        %1018 = vmatpush.msra.mxu0 0.0
        %1019 = vmatpush.msra.mxu0 0.0
        %1020 = vmatpush.msra.mxu0 0.0
        %1021 = vmatpush.msra.mxu0 0.0
        %1022 = vmatpush.msra.mxu0 0.0
        %1023 = vmatpush.msra.mxu0 0.0
        %1024 = vmatpush.msra.mxu0 0.0
        %1025 = vmatpush.msra.mxu0 0.0
        %1026 = vmatpush.msra.mxu0 0.0
        %1027 = vmatpush.msra.mxu0 0.0
        %1028 = vmatpush.msra.mxu0 0.0
        %1029 = vmatpush.msra.mxu0 %v827
        %1030 = vmatmul.f32.gmra.mxu0 %v963
        %v1031 = vpop.f32.mrf.mxu0
        %v1032 = vadd.f32 %v950, %v1031
        %1033 = vmatmul.f32.gmra.mxu0 %v966
        %v1034 = vpop.f32.mrf.mxu0
        %v1035 = vadd.f32 %v951, %v1034
        %1036 = vdwg.mxu0
        %1037 = vmatpush.msra.mxu0 0.0
        %1038 = vmatpush.msra.mxu0 0.0
        %1039 = vmatpush.msra.mxu0 0.0
        %1040 = vmatpush.msra.mxu0 0.0
        %1041 = vmatpush.msra.mxu0 0.0
        %1042 = vmatpush.msra.mxu0 0.0
        %1043 = vmatpush.msra.mxu0 0.0
        %1044 = vmatpush.msra.mxu0 0.0
        %1045 = vmatpush.msra.mxu0 0.0
        %1046 = vmatpush.msra.mxu0 0.0
        %1047 = vmatpush.msra.mxu0 0.0
        %1048 = vmatpush.msra.mxu0 0.0
        %1049 = vmatpush.msra.mxu0 0.0
        %1050 = vmatpush.msra.mxu0 0.0
        %1051 = vmatpush.msra.mxu0 0.0
        %1052 = vmatpush.msra.mxu0 %v850
        %1053 = vmatmul.f32.gmra.mxu0 %v963
        %v1054 = vpop.f32.mrf.mxu0
        %v1055 = vadd.f32 %v952, %v1054
        %1056 = vmatmul.f32.gmra.mxu0 %v966
        %v1057 = vpop.f32.mrf.mxu0
        %v1058 = vadd.f32 %v953, %v1057
        %1059 = vdwg.mxu0
        %1060 = vmatpush.msra.mxu0 0.0
        %1061 = vmatpush.msra.mxu0 0.0
        %1062 = vmatpush.msra.mxu0 0.0
        %1063 = vmatpush.msra.mxu0 0.0
        %1064 = vmatpush.msra.mxu0 0.0
        %1065 = vmatpush.msra.mxu0 0.0
        %1066 = vmatpush.msra.mxu0 0.0
        %1067 = vmatpush.msra.mxu0 0.0
        %1068 = vmatpush.msra.mxu0 0.0
        %1069 = vmatpush.msra.mxu0 0.0
        %1070 = vmatpush.msra.mxu0 0.0
        %1071 = vmatpush.msra.mxu0 0.0
        %1072 = vmatpush.msra.mxu0 0.0
        %1073 = vmatpush.msra.mxu0 0.0
        %1074 = vmatpush.msra.mxu0 0.0
        %1075 = vmatpush.msra.mxu0 %v873
        %1076 = vmatmul.f32.gmra.mxu0 %v963
        %v1077 = vpop.f32.mrf.mxu0
        %v1078 = vadd.f32 %v954, %v1077
        %1079 = vmatmul.f32.gmra.mxu0 %v966
        %v1080 = vpop.f32.mrf.mxu0
        %v1081 = vadd.f32 %v955, %v1080
        %1082 = vdwg.mxu0
        %1083 = vmatpush.msra.mxu0 0.0
        %1084 = vmatpush.msra.mxu0 0.0
        %1085 = vmatpush.msra.mxu0 0.0
        %1086 = vmatpush.msra.mxu0 0.0
        %1087 = vmatpush.msra.mxu0 0.0
        %1088 = vmatpush.msra.mxu0 0.0
        %1089 = vmatpush.msra.mxu0 0.0
        %1090 = vmatpush.msra.mxu0 0.0
        %1091 = vmatpush.msra.mxu0 0.0
        %1092 = vmatpush.msra.mxu0 0.0
        %1093 = vmatpush.msra.mxu0 0.0
        %1094 = vmatpush.msra.mxu0 0.0
        %1095 = vmatpush.msra.mxu0 0.0
        %1096 = vmatpush.msra.mxu0 0.0
        %1097 = vmatpush.msra.mxu0 0.0
        %1098 = vmatpush.msra.mxu0 %v896
        %1099 = vmatmul.f32.gmra.mxu0 %v963
        %v1100 = vpop.f32.mrf.mxu0
        %v1101 = vadd.f32 %v956, %v1100
        %1102 = vmatmul.f32.gmra.mxu0 %v966
        %v1103 = vpop.f32.mrf.mxu0
        %v1104 = vadd.f32 %v957, %v1103
        %1105 = vdwg.mxu0
        %1106 = vmatpush.msra.mxu0 0.0
        %1107 = vmatpush.msra.mxu0 0.0
        %1108 = vmatpush.msra.mxu0 0.0
        %1109 = vmatpush.msra.mxu0 0.0
        %1110 = vmatpush.msra.mxu0 0.0
        %1111 = vmatpush.msra.mxu0 0.0
        %1112 = vmatpush.msra.mxu0 0.0
        %1113 = vmatpush.msra.mxu0 0.0
        %1114 = vmatpush.msra.mxu0 0.0
        %1115 = vmatpush.msra.mxu0 0.0
        %1116 = vmatpush.msra.mxu0 0.0
        %1117 = vmatpush.msra.mxu0 0.0
        %1118 = vmatpush.msra.mxu0 0.0
        %1119 = vmatpush.msra.mxu0 0.0
        %1120 = vmatpush.msra.mxu0 0.0
        %1121 = vmatpush.msra.mxu0 %v919
        %1122 = vmatmul.f32.gmra.mxu0 %v963
        %v1123 = vpop.f32.mrf.mxu0
        %v1124 = vadd.f32 %v958, %v1123
        %1125 = vmatmul.f32.gmra.mxu0 %v966
        %v1126 = vpop.f32.mrf.mxu0
        %v1127 = vadd.f32 %v959, %v1126
        %1128 = vdwg.mxu0
        %1129 = vmatpush.msra.mxu0 0.0
        %1130 = vmatpush.msra.mxu0 0.0
        %1131 = vmatpush.msra.mxu0 0.0
        %1132 = vmatpush.msra.mxu0 0.0
        %1133 = vmatpush.msra.mxu0 0.0
        %1134 = vmatpush.msra.mxu0 0.0
        %1135 = vmatpush.msra.mxu0 0.0
        %1136 = vmatpush.msra.mxu0 0.0
        %1137 = vmatpush.msra.mxu0 0.0
        %1138 = vmatpush.msra.mxu0 0.0
        %1139 = vmatpush.msra.mxu0 0.0
        %1140 = vmatpush.msra.mxu0 0.0
        %1141 = vmatpush.msra.mxu0 0.0
        %1142 = vmatpush.msra.mxu0 0.0
        %1143 = vmatpush.msra.mxu0 0.0
        %1144 = vmatpush.msra.mxu0 %v942
        %1145 = vmatmul.f32.gmra.mxu0 %v963
        %v1146 = vpop.f32.mrf.mxu0
        %v1147 = vadd.f32 %v960, %v1146
        %1148 = vmatmul.f32.gmra.mxu0 %v966
        %v1149 = vpop.f32.mrf.mxu0
        %v1150 = vadd.f32 %v961, %v1149
        %1151 = vdwg.mxu0
        %v1152 = vmax.f32 %v986, 0.0
        %v1153 = vmax.f32 %v989, 0.0
        %v1154 = vmax.f32 %v1009, 0.0
        %v1155 = vmax.f32 %v1012, 0.0
        %v1156 = vmax.f32 %v1032, 0.0
        %v1157 = vmax.f32 %v1035, 0.0
        %v1158 = vmax.f32 %v1055, 0.0
        %v1159 = vmax.f32 %v1058, 0.0
        %v1160 = vmax.f32 %v1078, 0.0
        %v1161 = vmax.f32 %v1081, 0.0
        %v1162 = vmax.f32 %v1101, 0.0
        %v1163 = vmax.f32 %v1104, 0.0
        %v1164 = vmax.f32 %v1124, 0.0
        %v1165 = vmax.f32 %v1127, 0.0
        %v1166 = vmax.f32 %v1147, 0.0
        %v1167 = vmax.f32 %v1150, 0.0
        %1168 = vst.msk [vmem:[%s331] sm:$0xff] %vm356, %v1152
        %1169 = vst.msk [vmem:[%s331 + $0x8] sm:$0xff] %vm356, %v1153
        %1170 = vst.msk [vmem:[%s331 + $0x10] sm:$0xff] %vm356, %v1154
        %1171 = vst.msk [vmem:[%s331 + $0x18] sm:$0xff] %vm356, %v1155
        %1172 = vst.msk [vmem:[%s331 + $0x20] sm:$0xff] %vm356, %v1156
        %1173 = vst.msk [vmem:[%s331 + $0x28] sm:$0xff] %vm356, %v1157
        %1174 = vst.msk [vmem:[%s331 + $0x30] sm:$0xff] %vm356, %v1158
        %1175 = vst.msk [vmem:[%s331 + $0x38] sm:$0xff] %vm356, %v1159
        %1176 = vst.msk [vmem:[%s331 + $0x40] sm:$0xff] %vm356, %v1160
        %1177 = vst.msk [vmem:[%s331 + $0x48] sm:$0xff] %vm356, %v1161
        %1178 = vst.msk [vmem:[%s331 + $0x50] sm:$0xff] %vm356, %v1162
        %1179 = vst.msk [vmem:[%s331 + $0x58] sm:$0xff] %vm356, %v1163
        %1180 = vst.msk [vmem:[%s331 + $0x60] sm:$0xff] %vm356, %v1164
        %1181 = vst.msk [vmem:[%s331 + $0x68] sm:$0xff] %vm356, %v1165
        %1182 = vst.msk [vmem:[%s331 + $0x70] sm:$0xff] %vm356, %v1166
        %1183 = vst.msk [vmem:[%s331 + $0x78] sm:$0xff] %vm356, %v1167
        %s1184 = sand.u32 %s193, 1
        %s1185 = scalar_lea.sflag [#allocation6], %s1184
        %s1186 = sand.u32 %s193, 1
        %s1187 = smul.addr %s1186, 128
        %s1188 = scalar_lea.vmem [#allocation7], %s1187
        // Predicated region
        $region49: #{_merge_forward.1} parent=43 // pred_check
          %p1189 = pneg %p203
        $region50: #{_merge_forward.1} parent=43 // pred_check_branch
          %1191 = sbr.rel (%p1189) target = $region52
        $region51: #{_merge_forward.1} parent=43 // pred_region
          %s1192 = smul.u32 8, %s28
          %1194 = vsyncadd %s1185, 0
          %s1195 = smul.addr %s1192, 2
          %s1196 = smul.addr %s27, 16
          %s1197 = sadd.s32 %s1195, %s1196
          %s1198 = smul.addr %s1197, 8
          %s1199 = scalar_lea.hbm %s6, %s1198
          %s1200 = sshll.u32 %s1188, 4
          %s1201 = int_to_ptr.vmem [resolvable:$true] %s1200
          %s1202 = sshll.u32 %s1199, 4
          %s1203 = int_to_ptr.hbm [resolvable:$true] %s1202
          %1208 = dma.vmem_to_hbm [thread:$0]  %s1201, 2048, %s1203, %s1185, 128, 128, 8
        $region52: #{_merge_forward.1} parent=43 // pred_fallthru
          _
      $region44: #{_merge_forward.1} parent=5 // pred_fallthru
        _
      %p1209 = scmp.le.s32.totalorder 2, %s18
      // Predicated region
      $region53: #{_merge_forward.1} parent=5 // pred_check
        %p1210 = pneg %p1209
      $region54: #{_merge_forward.1} parent=5 // pred_check_branch
        %1212 = sbr.rel (%p1210) target = $region56
      $region55: #{_merge_forward.1} parent=5 // pred_region
        %s1213 = ssub.s32 %s18, 2
        // Predicated region
        $region57: #{_merge_forward.1} parent=55 // pred_check
          %p1214 = pneg %p209
        $region58: #{_merge_forward.1} parent=55 // pred_check_branch
          %1216 = sbr.rel (%p1214) target = $region60
        $region59: #{_merge_forward.1} parent=55 // pred_region
          %s1217 = sand.u32 %s194, 1
          %s1218 = scalar_lea.sflag [#allocation6], %s1217
          %s1219 = sand.u32 %s194, 1
          %s1220 = smul.addr %s1219, 128
          %s1221 = scalar_lea.vmem [#allocation7], %s1220
          %1223 = dma.done %s1218, 2048
        $region60: #{_merge_forward.1} parent=55 // pred_fallthru
          _
      $region56: #{_merge_forward.1} parent=5 // pred_fallthru
        _
    $region6: #{_merge_forward.1} parent=1 // loop_footer
      %s22 = sadd.s32 1, %s18
    $region7: #{_merge_forward.1} parent=1 // loop_footer_branch
      %17 = sbr.rel target = $region3
    $region8: #{_merge_forward.1} parent=1 // loop_exit
      _
    %1224 = vsyncpa [#allocation5], 1
    %s1225 = scalar_lea.sflag [#allocation5], 1
    %1226 = vsyncpa %s1225, 1
    %1227 = vsyncpa [#allocation6], 1
    %s1228 = scalar_lea.sflag [#allocation6], 1
    %1229 = vsyncpa %s1228, 1

</llo_original>
